<compile_context>
chip_gen: v7x
topology: tpu7x:2x2x1
jax: 0.10.0
libtpu: 0.0.40
codegen_flags: <defaults>
</compile_context>

<pallas_src>
import jax
import jax.numpy as jnp
from jax.experimental import pallas as pl
from jax.experimental.pallas import tpu as pltpu

_BLOCK_BATCH = 4096      # max rows of x per grid step (review: 4096-8192; 4096 fits v5e)
_SPLIT_THRESHOLD = 256   # above this, force >=2 grid steps (v7x megacore sharding)

# pl.reciprocal(approx=True) introduces ~1e-3-level relative error vs an exact
# divide; it is largest where sigmoid saturates (where it matters least).  Set
# False for a bit-exact-ish sigmoid denominator.
_APPROX_SIGMOID_RECIP = True


def _cdiv(a, b):
    return (a + b - 1) // b


def _round_up(x, m):
    return _cdiv(x, m) * m


def _disc_kernel_nout1(x_ref, w1_ref, b1_ref, w2_ref, b2_ref, w3r_ref, b3_ref, o_ref):
    """Fused MLP forward for n_output == 1.

    w3 is passed as a (1, n_h2) f32 row, b3 as a (1,) f32 scalar in SMEM, and the
    output block is the lane-dense row (1, tb).
    """
    x = x_ref[...].astype(jnp.bfloat16)  # no-op if x already arrives in bf16

    # Layer 1: Linear (MXU, bf16 operands, f32 accumulate) + LeakyReLU(0.2) in f32.
    h = jnp.dot(x, w1_ref[...], preferred_element_type=jnp.float32) + b1_ref[...]
    h = jnp.where(h >= 0, h, 0.2 * h)

    # Layer 2: Linear + LeakyReLU(0.2).
    h = jnp.dot(h.astype(jnp.bfloat16), w2_ref[...],
                preferred_element_type=jnp.float32) + b2_ref[...]
    h = jnp.where(h >= 0, h, 0.2 * h)

    # Output layer (N=1): VPU multiply + XLU lane reduction instead of a degenerate
    # MXU matmul.  Relayout the (tb,1) column to a lane-dense (1,tb) row *before*
    # the transcendental tail so bias-add / exp / reciprocal run lane-dense too.
    z = jnp.sum(h * w3r_ref[...], axis=-1, keepdims=True)        # (tb, 1) f32
    z = jnp.transpose(z, (1, 0)) + b3_ref[0]                     # (1, tb), bias from SMEM

    # Sigmoid: exp on the EUP, (approximate) reciprocal also on the EUP.
    p = pl.reciprocal(1.0 + jnp.exp(-z), approx=_APPROX_SIGMOID_RECIP)
    o_ref[...] = p.astype(o_ref.dtype)                           # unmasked lane-dense store


def _disc_kernel_general(x_ref, w1_ref, b1_ref, w2_ref, b2_ref, w3_ref, b3_ref, o_ref):
    """Fused MLP forward for n_output > 1 (all three layers on the MXU)."""
    x = x_ref[...].astype(jnp.bfloat16)

    h = jnp.dot(x, w1_ref[...], preferred_element_type=jnp.float32) + b1_ref[...]
    h = jnp.where(h >= 0, h, 0.2 * h)

    h = jnp.dot(h.astype(jnp.bfloat16), w2_ref[...],
                preferred_element_type=jnp.float32) + b2_ref[...]
    h = jnp.where(h >= 0, h, 0.2 * h)

    z = jnp.dot(h.astype(jnp.bfloat16), w3_ref[...],
                preferred_element_type=jnp.float32) + b3_ref[...]
    o_ref[...] = pl.reciprocal(1.0 + jnp.exp(-z),
                               approx=_APPROX_SIGMOID_RECIP).astype(o_ref.dtype)


def _batch_tile(batch):
    """Pick the batch tile.

    Small batches use a single full-array block (no (8,128) divisibility needed).
    Larger batches use a multiple-of-128 tile capped at _BLOCK_BATCH, chosen so the
    grid always has >=2 steps (lets "parallel" shard across both v7x TensorCores).
    """
    if batch <= _SPLIT_THRESHOLD:
        return batch
    return min(_BLOCK_BATCH, _round_up(_cdiv(batch, 2), 128))


@jax.jit
def discriminator_forward(x, w1, b1, w2, b2, w3, b3):
    batch, n_input = x.shape
    n_h1 = w1.shape[1]
    n_h2 = w2.shape[1]
    n_out = w3.shape[1]

    tb = _batch_tile(batch)
    grid = (_cdiv(batch, tb),)   # ragged last block handled by Pallas (no jnp.pad copy)

    # bf16 weights for the MXU; biases stay f32.  (Weights are tiny; this cast is
    # negligible -- we deliberately do NOT cast the large x stream in the wrapper.)
    w1b = w1.astype(jnp.bfloat16)
    w2b = w2.astype(jnp.bfloat16)

    x_spec = pl.BlockSpec((tb, n_input), lambda i: (i, 0))
    # Weights/biases: constant block index -> fetched once, VMEM-resident across steps.
    w1_spec = pl.BlockSpec((n_input, n_h1), lambda i: (0, 0))
    b1_spec = pl.BlockSpec((1, n_h1), lambda i: (0, 0))
    w2_spec = pl.BlockSpec((n_h1, n_h2), lambda i: (0, 0))
    b2_spec = pl.BlockSpec((1, n_h2), lambda i: (0, 0))

    compiler_params = pltpu.CompilerParams(
        dimension_semantics=("parallel",),      # shard batch steps across v7x TCs
        vmem_limit_bytes=32 * 1024 * 1024,      # raise v5e's 16 MiB default scoped VMEM
    )

    if n_out == 1:
        # Lane-dense output: (1, batch) row, block (1, tb); reshape back for free.
        out = pl.pallas_call(
            _disc_kernel_nout1,
            out_shape=jax.ShapeDtypeStruct((1, batch), jnp.float32),
            grid=grid,
            in_specs=[
                x_spec, w1_spec, b1_spec, w2_spec, b2_spec,
                pl.BlockSpec((1, n_h2), lambda i: (0, 0)),                 # w3 row
                pl.BlockSpec(memory_space=pltpu.MemorySpace.SMEM),          # b3 scalar
            ],
            out_specs=pl.BlockSpec((1, tb), lambda i: (0, i)),
            compiler_params=compiler_params,
        )(x, w1b, b1, w2b, b2,
          w3.T.astype(jnp.float32),              # (1, n_h2) row for the VPU multiply
          b3.reshape((1,)).astype(jnp.float32))  # scalar bias -> SMEM
        return out.reshape(batch, 1)             # (1,batch)->(batch,1): layout-free reshape

    out = pl.pallas_call(
        _disc_kernel_general,
        out_shape=jax.ShapeDtypeStruct((batch, n_out), jnp.float32),
        grid=grid,
        in_specs=[
            x_spec, w1_spec, b1_spec, w2_spec, b2_spec,
            pl.BlockSpec((n_h2, n_out), lambda i: (0, 0)),
            pl.BlockSpec((1, n_out), lambda i: (0, 0)),
        ],
        out_specs=pl.BlockSpec((tb, n_out), lambda i: (i, 0)),
        compiler_params=compiler_params,
    )(x, w1b, b1, w2b, b2, w3.astype(jnp.bfloat16), b3)
    return out


# -------------------- init (matches the PyTorch module) --------------------

def _xavier_uniform(key, fan_in, fan_out, gain):
    # nn.init.xavier_uniform_ distribution; stored as [fan_in, fan_out]
    # (transposed relative to PyTorch's [out, in] Linear weight).
    bound = gain * jnp.sqrt(6.0 / (fan_in + fan_out))
    return jax.random.uniform(
        key, (fan_in, fan_out), minval=-bound, maxval=bound, dtype=jnp.float32
    )


def _linear_bias(key, fan_in, fan_out):
    # PyTorch default Linear bias init: U(-1/sqrt(fan_in), 1/sqrt(fan_in)).
    bound = 1.0 / jnp.sqrt(jnp.asarray(fan_in, jnp.float32))
    return jax.random.uniform(
        key, (1, fan_out), minval=-bound, maxval=bound, dtype=jnp.float32
    )


def init_params(key, n_input, n_features, n_output):
    keys = jax.random.split(key, 6)
    gain_lrelu = jnp.sqrt(2.0 / (1.0 + 0.01 ** 2))   # calculate_gain('leaky_relu')
    gain_sigmoid = 1.0                                # calculate_gain('sigmoid')

    w1 = _xavier_uniform(keys[0], n_input, n_features[0], gain_lrelu)
    b1 = _linear_bias(keys[1], n_input, n_features[0])
    w2 = _xavier_uniform(keys[2], n_features[0], n_features[1], gain_lrelu)
    b2 = _linear_bias(keys[3], n_features[0], n_features[1])
    w3 = _xavier_uniform(keys[4], n_features[1], n_output, gain_sigmoid)
    b3 = _linear_bias(keys[5], n_features[1], n_output)
    return w1, b1, w2, b2, w3, b3


# -------------------- references --------------------

def reference_forward(x, w1, b1, w2, b2, w3, b3):
    # Exact (f32) semantics of the PyTorch module.
    h = x @ w1 + b1
    h = jnp.where(h >= 0, h, 0.2 * h)
    h = h @ w2 + b2
    h = jnp.where(h >= 0, h, 0.2 * h)
    z = h @ w3 + b3
    return jax.nn.sigmoid(z)


def reference_forward_bf16(x, w1, b1, w2, b2, w3, b3, out_layer_bf16=False):
    # Mirrors the kernel's numerics (bf16 matmul operands, f32 accumulation).
    # out_layer_bf16=True matches the n_out>1 kernel path (bf16 layer-3 matmul);
    # the default matches the n_out==1 path (f32 multiply + reduce).
    h = jnp.dot(x.astype(jnp.bfloat16), w1.astype(jnp.bfloat16),
                preferred_element_type=jnp.float32) + b1
    h = jnp.where(h >= 0, h, 0.2 * h)
    h = jnp.dot(h.astype(jnp.bfloat16), w2.astype(jnp.bfloat16),
                preferred_element_type=jnp.float32) + b2
    h = jnp.where(h >= 0, h, 0.2 * h)
    if out_layer_bf16:
        z = jnp.dot(h.astype(jnp.bfloat16), w3.astype(jnp.bfloat16),
                    preferred_element_type=jnp.float32) + b3
    else:
        z = h @ w3 + b3
    return jax.nn.sigmoid(z)


if __name__ == "__main__":
    key = jax.random.PRNGKey(0)
    k_x, k_p, k_p2 = jax.random.split(key, 3)

    n_input = 32           # input_shape[-1]
    n_features = (64, 32)  # hidden sizes
    n_output = 1           # output_shape[0]

    params = init_params(k_p, n_input, n_features, n_output)

    # Main small case (single full-array block).
    x = jax.random.normal(k_x, (8, n_input), dtype=jnp.float32)
    out = jax.block_until_ready(discriminator_forward(x, *params))
    assert out.shape == (8, n_output)
    assert jnp.allclose(out, reference_forward_bf16(x, *params), atol=5e-3, rtol=5e-3)
    assert jnp.allclose(out, reference_forward(x, *params), atol=5e-2)

    # Batch not a multiple of the sublane width (full-array block path).
    x2 = jax.random.normal(jax.random.PRNGKey(1), (13, n_input), dtype=jnp.float32)
    out2 = jax.block_until_ready(discriminator_forward(x2, *params))
    assert out2.shape == (13, n_output)
    assert jnp.allclose(out2, reference_forward_bf16(x2, *params), atol=5e-3, rtol=5e-3)

    # Multi-step grid with a ragged last block (no jnp.pad copy of x).
    x3 = jax.random.normal(jax.random.PRNGKey(2), (600, n_input), dtype=jnp.float32)
    out3 = jax.block_until_ready(discriminator_forward(x3, *params))
    assert out3.shape == (600, n_output)
    assert jnp.allclose(out3, reference_forward_bf16(x3, *params), atol=5e-3, rtol=5e-3)

    # n_output > 1 exercises the general (all-MXU) kernel path.
    params3 = init_params(k_p2, n_input, n_features, 3)
    x4 = jax.random.normal(jax.random.PRNGKey(3), (16, n_input), dtype=jnp.float32)
    out4 = jax.block_until_ready(discriminator_forward(x4, *params3))
    assert out4.shape == (16, 3)
    assert jnp.allclose(out4, reference_forward_bf16(x4, *params3, out_layer_bf16=True),
                        atol=5e-3, rtol=5e-3)

    print("KERNEL_OK")
</pallas_src>

<mosaic_0001>
module attributes {stable_mosaic.version = 11 : i64} {
  func.func @_disc_kernel_nout1(%arg0: i32, %arg1: memref<8x32xf32, #tpu.memory_space<vmem>>, %arg2: memref<32x64xbf16, #tpu.memory_space<vmem>>, %arg3: memref<1x64xf32, #tpu.memory_space<vmem>>, %arg4: memref<64x32xbf16, #tpu.memory_space<vmem>>, %arg5: memref<1x32xf32, #tpu.memory_space<vmem>>, %arg6: memref<1x32xf32, #tpu.memory_space<vmem>>, %arg7: memref<1xf32, #tpu.memory_space<smem>>, %arg8: memref<1x8xf32, #tpu.memory_space<vmem>>) attributes {dimension_semantics = [#tpu.dimension_semantics<parallel>], iteration_bounds = array<i64: 1>, scalar_prefetch = 0 : i64, scratch_operands = 0 : i64, tpu.core_type = #tpu.core_type<tc>, window_params = [{transform_indices = @transform_0, window_bounds = array<i64: 8, 32>}, {pipeline_mode = #tpu.pipeline_mode<synchronous>, transform_indices = @transform_1, window_bounds = array<i64: 32, 64>}, {pipeline_mode = #tpu.pipeline_mode<synchronous>, transform_indices = @transform_2, window_bounds = array<i64: 1, 64>}, {pipeline_mode = #tpu.pipeline_mode<synchronous>, transform_indices = @transform_3, window_bounds = array<i64: 64, 32>}, {pipeline_mode = #tpu.pipeline_mode<synchronous>, transform_indices = @transform_4, window_bounds = array<i64: 1, 32>}, {pipeline_mode = #tpu.pipeline_mode<synchronous>, transform_indices = @transform_5, window_bounds = array<i64: 1, 32>}, {transform_indices = @transform_6, window_bounds = array<i64: 1>}, {transform_indices = @transform_7, window_bounds = array<i64: 1, 8>}]} {
    %c0 = arith.constant 0 : index
    %c0_0 = arith.constant 0 : index
    %0 = vector.load %arg1[%c0, %c0_0] : memref<8x32xf32, #tpu.memory_space<vmem>>, vector<8x32xf32>
    %1 = arith.truncf %0 : vector<8x32xf32> to vector<8x32xbf16>
    %c0_1 = arith.constant 0 : index
    %c0_2 = arith.constant 0 : index
    %2 = vector.load %arg2[%c0_1, %c0_2] : memref<32x64xbf16, #tpu.memory_space<vmem>>, vector<32x64xbf16>
    %cst = arith.constant dense<0.000000e+00> : vector<8x64xf32>
    %3 = tpu.matmul %1, %2, %cst {dimension_numbers = #tpu.dot_dimension_numbers<[1], [0], [0], [1], [0, 0, 1, 1], [], []>} : vector<8x32xbf16>, vector<32x64xbf16>, vector<8x64xf32> -> vector<8x64xf32>
    %c0_3 = arith.constant 0 : index
    %c0_4 = arith.constant 0 : index
    %4 = vector.load %arg3[%c0_3, %c0_4] : memref<1x64xf32, #tpu.memory_space<vmem>>, vector<1x64xf32>
    %5 = vector.broadcast %4 : vector<1x64xf32> to vector<8x64xf32>
    %6 = arith.addf %3, %5 : vector<8x64xf32>
    %cst_5 = arith.constant 0.000000e+00 : f32
    %7 = vector.broadcast %cst_5 : f32 to vector<8x64xf32>
    %8 = arith.cmpf oge, %6, %7 : vector<8x64xf32>
    %cst_6 = arith.constant 2.000000e-01 : f32
    %9 = vector.broadcast %cst_6 : f32 to vector<8x64xf32>
    %10 = arith.mulf %9, %6 : vector<8x64xf32>
    %11 = arith.select %8, %6, %10 : vector<8x64xi1>, vector<8x64xf32>
    %12 = arith.truncf %11 : vector<8x64xf32> to vector<8x64xbf16>
    %c0_7 = arith.constant 0 : index
    %c0_8 = arith.constant 0 : index
    %13 = vector.load %arg4[%c0_7, %c0_8] : memref<64x32xbf16, #tpu.memory_space<vmem>>, vector<64x32xbf16>
    %cst_9 = arith.constant dense<0.000000e+00> : vector<8x32xf32>
    %14 = tpu.matmul %12, %13, %cst_9 {dimension_numbers = #tpu.dot_dimension_numbers<[1], [0], [0], [1], [0, 0, 1, 1], [], []>} : vector<8x64xbf16>, vector<64x32xbf16>, vector<8x32xf32> -> vector<8x32xf32>
    %c0_10 = arith.constant 0 : index
    %c0_11 = arith.constant 0 : index
    %15 = vector.load %arg5[%c0_10, %c0_11] : memref<1x32xf32, #tpu.memory_space<vmem>>, vector<1x32xf32>
    %16 = vector.broadcast %15 : vector<1x32xf32> to vector<8x32xf32>
    %17 = arith.addf %14, %16 : vector<8x32xf32>
    %cst_12 = arith.constant 0.000000e+00 : f32
    %18 = vector.broadcast %cst_12 : f32 to vector<8x32xf32>
    %19 = arith.cmpf oge, %17, %18 : vector<8x32xf32>
    %cst_13 = arith.constant 2.000000e-01 : f32
    %20 = vector.broadcast %cst_13 : f32 to vector<8x32xf32>
    %21 = arith.mulf %20, %17 : vector<8x32xf32>
    %22 = arith.select %19, %17, %21 : vector<8x32xi1>, vector<8x32xf32>
    %c0_14 = arith.constant 0 : index
    %c0_15 = arith.constant 0 : index
    %23 = vector.load %arg6[%c0_14, %c0_15] : memref<1x32xf32, #tpu.memory_space<vmem>>, vector<1x32xf32>
    %24 = vector.broadcast %23 : vector<1x32xf32> to vector<8x32xf32>
    %25 = arith.mulf %22, %24 : vector<8x32xf32>
    %cst_16 = arith.constant dense<0.000000e+00> : vector<8xf32>
    %26 = vector.multi_reduction <add>, %25, %cst_16 [1] : vector<8x32xf32> to vector<8xf32>
    %27 = vector.shape_cast %26 : vector<8xf32> to vector<8x1xf32>
    %28 = tpu.transpose %27, [1, 0] : vector<8x1xf32> -> vector<1x8xf32>
    %c0_17 = arith.constant 0 : index
    %29 = memref.load %arg7[%c0_17] : memref<1xf32, #tpu.memory_space<smem>>
    %30 = vector.broadcast %29 : f32 to vector<1x8xf32>
    %31 = arith.addf %28, %30 : vector<1x8xf32>
    %cst_18 = arith.constant 0.000000e+00 : f32
    %32 = vector.broadcast %cst_18 : f32 to vector<1x8xf32>
    %33 = arith.subf %32, %31 : vector<1x8xf32>
    %34 = math.exp %33 : vector<1x8xf32>
    %cst_19 = arith.constant 1.000000e+00 : f32
    %35 = vector.broadcast %cst_19 : f32 to vector<1x8xf32>
    %36 = arith.addf %35, %34 : vector<1x8xf32>
    %37 = tpu.reciprocal %36 {approx = true} : vector<1x8xf32> -> vector<1x8xf32>
    %c0_20 = arith.constant 0 : index
    %c0_21 = arith.constant 0 : index
    %38 = vector.load %arg8[%c0_20, %c0_21] : memref<1x8xf32, #tpu.memory_space<vmem>>, vector<1x8xf32>
    tpu.vector_store %arg8[%c0_20, %c0_21], %37 {strides = array<i32>} : memref<1x8xf32, #tpu.memory_space<vmem>>, vector<1x8xf32>,
    return
  }
  func.func @transform_0(%arg0: i32) -> (i32, i32) {
    %c0_i32 = arith.constant 0 : i32
    %c0_i32_0 = arith.constant 0 : i32
    return %arg0, %c0_i32 : i32, i32
  }
  func.func @transform_1(%arg0: i32) -> (i32, i32) {
    %c0_i32 = arith.constant 0 : i32
    %c0_i32_0 = arith.constant 0 : i32
    %c0_i32_1 = arith.constant 0 : i32
    return %c0_i32, %c0_i32_0 : i32, i32
  }
  func.func @transform_2(%arg0: i32) -> (i32, i32) {
    %c0_i32 = arith.constant 0 : i32
    %c0_i32_0 = arith.constant 0 : i32
    %c0_i32_1 = arith.constant 0 : i32
    return %c0_i32, %c0_i32_0 : i32, i32
  }
  func.func @transform_3(%arg0: i32) -> (i32, i32) {
    %c0_i32 = arith.constant 0 : i32
    %c0_i32_0 = arith.constant 0 : i32
    %c0_i32_1 = arith.constant 0 : i32
    return %c0_i32, %c0_i32_0 : i32, i32
  }
  func.func @transform_4(%arg0: i32) -> (i32, i32) {
    %c0_i32 = arith.constant 0 : i32
    %c0_i32_0 = arith.constant 0 : i32
    %c0_i32_1 = arith.constant 0 : i32
    return %c0_i32, %c0_i32_0 : i32, i32
  }
  func.func @transform_5(%arg0: i32) -> (i32, i32) {
    %c0_i32 = arith.constant 0 : i32
    %c0_i32_0 = arith.constant 0 : i32
    %c0_i32_1 = arith.constant 0 : i32
    return %c0_i32, %c0_i32_0 : i32, i32
  }
  func.func @transform_6(%arg0: i32) -> i32 {
    %c0_i32 = arith.constant 0 : i32
    %c0_i32_0 = arith.constant 0 : i32
    return %c0_i32 : i32
  }
  func.func @transform_7(%arg0: i32) -> (i32, i32) {
    %c0_i32 = arith.constant 0 : i32
    %c0_i32_0 = arith.constant 0 : i32
    return %c0_i32, %arg0 : i32, i32
  }
}

</mosaic_0001>

<llo_original>
// kernel: discriminator_forward.1
$region0: #{discriminator_forward.1}
  #allocation0 [shape = 'u32[]', space=smem, size = 0x4, offset = 0x4, fixed_abs, tag = 'smem constant byte address 0x4 - core index']
  #allocation1 [shape = 'u32[144,128]{1,0:T(1,128)}', space=vmem, size = 0x12000, scoped, tag = 'internal scratch']
  #allocation2 [shape = 'f32[1]{0:T(128)S(6)}', space=smem, size = 0x200, scoped, tag = 'scoped memory for discriminator_forward.1']
  %s0 = inlined_call_operand.vmem [shape: f32[8,32], index: 0, kind: input, shape index: {}]
  %s1 = inlined_call_operand.vmem [shape: bf16[32,64], index: 1, kind: input, shape index: {}]
  %s2 = inlined_call_operand.vmem [shape: f32[1,64], index: 2, kind: input, shape index: {}]
  %s3 = inlined_call_operand.vmem [shape: bf16[64,32], index: 3, kind: input, shape index: {}]
  %s4 = inlined_call_operand.vmem [shape: f32[1,32], index: 4, kind: input, shape index: {}]
  %s5 = inlined_call_operand.vmem [shape: f32[1,32], index: 5, kind: input, shape index: {}]
  %s6 = inlined_call_operand.<no memory space> [shape: f32[1], index: 6, kind: input, shape index: {}]
  %s7 = inlined_call_operand.hbm [shape: f32[1,8], index: 7, kind: output, shape index: {}]
  %s8 = sld [smem:[#allocation0]]
  $region38: #{discriminator_forward.1} parent=0
    _
  %s10 = ssub.s32 1, %s8
  %s11 = scalar_select 0, %s10, %s8
  %12 = sst [smem:[#allocation2]] %s6
  $region1: #{discriminator_forward.1} parent=0
    #allocation3 [shape = 'u8[512]{0}', space=vmem, size = 0x400, scoped, tag = 'output window, operand 0, single buffered']
    #allocation4 [shape = 's32[1]{0}', space=sflag, size = 0x4, scoped, tag = 'scoped memory for discriminator_forward.1']
    %13 = vsyncpa [#allocation4], 0
    // Predicated region
    $region2: #{discriminator_forward.1} parent=1 // pred_check
      _
    $region3: #{discriminator_forward.1} parent=1 // pred_check_branch
      %15 = sbr.rel (0) target = $region5
    $region4: #{discriminator_forward.1} parent=1 // pred_region
      _
    $region5: #{discriminator_forward.1} parent=1 // pred_fallthru
      _
    // Predicated region
    $region6: #{discriminator_forward.1} parent=1 // pred_check
      _
    $region7: #{discriminator_forward.1} parent=1 // pred_check_branch
      %17 = sbr.rel (0) target = $region9
    $region8: #{discriminator_forward.1} parent=1 // pred_region
      _
    $region9: #{discriminator_forward.1} parent=1 // pred_fallthru
      _
    // Predicated region
    $region10: #{discriminator_forward.1} parent=1 // pred_check
      _
    $region11: #{discriminator_forward.1} parent=1 // pred_check_branch
      %19 = sbr.rel (0) target = $region13
    $region12: #{discriminator_forward.1} parent=1 // pred_region
      _
    $region13: #{discriminator_forward.1} parent=1 // pred_fallthru
      _
    // Predicated region
    $region14: #{discriminator_forward.1} parent=1 // pred_check
      _
    $region15: #{discriminator_forward.1} parent=1 // pred_check_branch
      %21 = sbr.rel (0) target = $region17
    $region16: #{discriminator_forward.1} parent=1 // pred_region
      _
    $region17: #{discriminator_forward.1} parent=1 // pred_fallthru
      _
    // Predicated region
    $region18: #{discriminator_forward.1} parent=1 // pred_check
      _
    $region19: #{discriminator_forward.1} parent=1 // pred_check_branch
      %23 = sbr.rel (0) target = $region21
    $region20: #{discriminator_forward.1} parent=1 // pred_region
      _
    $region21: #{discriminator_forward.1} parent=1 // pred_fallthru
      _
    // Predicated region
    $region22: #{discriminator_forward.1} parent=1 // pred_check
      _
    $region23: #{discriminator_forward.1} parent=1 // pred_check_branch
      %25 = sbr.rel (0) target = $region25
    $region24: #{discriminator_forward.1} parent=1 // pred_region
      _
    $region25: #{discriminator_forward.1} parent=1 // pred_fallthru
      _
    // Predicated region
    $region26: #{discriminator_forward.1} parent=1 // pred_check
      _
    $region27: #{discriminator_forward.1} parent=1 // pred_check_branch
      %27 = sbr.rel (0) target = $region29
    $region28: #{discriminator_forward.1} parent=1 // pred_region
      _
    $region29: #{discriminator_forward.1} parent=1 // pred_fallthru
      _
    %v29 = vld [vmem:[%s0] sm:$0xff]
    %v30 = vpack.c.bf16 %v29, %v29
    %v31 = vld [vmem:[%s1] sm:$0xf]
    %v32 = vld [vmem:[%s1 + $0x4] sm:$0xf]
    %v33 = vld [vmem:[%s1 + $0x8] sm:$0xf]
    %v34 = vld [vmem:[%s1 + $0xc] sm:$0xf]
    %v35 = vld [vmem:[%s2] sm:$0x1]
    %v37 = vlaneseq
    %v38 = vshrl.u32 %v37, 7
    %v39 = vsub.s32 0, %v38
    %v40 = vrot.slane %v35, %v39
    %v46 = vunpack.c.l.b16 %v31
    %v47 = vunpack.c.l.b16 %v32
    %v48 = vunpack.c.l.b16 %v33
    %v49 = vunpack.c.l.b16 %v34
    %v50 = vpack.c.b16 %v47, %v46
    %v51 = vpack.c.b16 %v49, %v48
    %vm54 = vcmask 261120
    %v56 = vsel %vm54, %v30, 0
    %58 = vmatprep.subr.bf16.mxu0 0
    %59 = vmatpush1.bf16.msra.mxu0 %v50
    %60 = vmatprep.subr.bf16.mxu0 0
    %61 = vmatpush1.bf16.msra.mxu0 %v51
    %62 = vmatprep.subr.bf16.mxu0 0
    %63 = vmatpush1.bf16.msra.mxu0 0
    %64 = vmatprep.subr.bf16.mxu0 0
    %65 = vmatpush1.bf16.msra.mxu0 0
    %66 = vmatprep.subr.bf16.mxu0 0
    %67 = vmatpush1.bf16.msra.mxu0 0
    %68 = vmatprep.subr.bf16.mxu0 0
    %69 = vmatpush1.bf16.msra.mxu0 0
    %70 = vmatprep.subr.bf16.mxu0 0
    %71 = vmatpush1.bf16.msra.mxu0 0
    %72 = vmatprep.subr.bf16.mxu0 0
    %73 = vmatpush1.bf16.msra.mxu0 0
    %74 = vmatprep.subr.bf16.mxu0 0
    %75 = vmatpush1.bf16.msra.mxu0 0
    %76 = vmatprep.subr.bf16.mxu0 0
    %77 = vmatpush1.bf16.msra.mxu0 0
    %78 = vmatprep.subr.bf16.mxu0 0
    %79 = vmatpush1.bf16.msra.mxu0 0
    %80 = vmatprep.subr.bf16.mxu0 0
    %81 = vmatpush1.bf16.msra.mxu0 0
    %82 = vmatprep.subr.bf16.mxu0 0
    %83 = vmatpush1.bf16.msra.mxu0 0
    %84 = vmatprep.subr.bf16.mxu0 0
    %85 = vmatpush1.bf16.msra.mxu0 0
    %86 = vmatprep.subr.bf16.mxu0 0
    %87 = vmatpush1.bf16.msra.mxu0 0
    %88 = vmatprep.subr.bf16.mxu0 0
    %89 = vmatpush1.bf16.msra.mxu0 0
    %90 = vmatprep.mubr.bf16.mxu0 0
    %91 = vmatmul.mubr.bf16.gmra.mrb[0].mxu0 %v56
    %v92 = vpop.f32.mrb[0].mxu0
    %v93 = vadd.f32 %v40, %v92
    %v94 = vpop.f32.mrb[0].mxu0
    %v95 = vpop.f32.mrb[0].mxu0
    %v96 = vpop.f32.mrb[0].mxu0
    %97 = vdwg.mxu0
    %vm98 = vcmp.ge.f32.partialorder %v93, 0.0
    %v99 = vmul.f32 %v93, 0.2
    %v100 = vsel %vm98, %v93, %v99
    %v101 = vpack.c.bf16 %v100, %v100
    %v102 = vld [vmem:[%s3] sm:$0xf]
    %v103 = vld [vmem:[%s3 + $0x4] sm:$0xf]
    %v104 = vld [vmem:[%s3 + $0x8] sm:$0xf]
    %v105 = vld [vmem:[%s3 + $0xc] sm:$0xf]
    %v106 = vld [vmem:[%s3 + $0x10] sm:$0xf]
    %v107 = vld [vmem:[%s3 + $0x14] sm:$0xf]
    %v108 = vld [vmem:[%s3 + $0x18] sm:$0xf]
    %v109 = vld [vmem:[%s3 + $0x1c] sm:$0xf]
    %v110 = vld [vmem:[%s4] sm:$0x1]
    %v112 = vlaneseq
    %v113 = vshrl.u32 %v112, 7
    %v114 = vsub.s32 0, %v113
    %v115 = vrot.slane %v110, %v114
    %v125 = vunpack.c.l.b16 %v102
    %v126 = vunpack.c.l.b16 %v103
    %v127 = vunpack.c.l.b16 %v104
    %v128 = vunpack.c.l.b16 %v105
    %v129 = vunpack.c.l.b16 %v106
    %v130 = vunpack.c.l.b16 %v107
    %v131 = vunpack.c.l.b16 %v108
    %v132 = vunpack.c.l.b16 %v109
    %v133 = vpack.c.b16 %v126, %v125
    %v134 = vpack.c.b16 %v128, %v127
    %v135 = vpack.c.b16 %v130, %v129
    %v136 = vpack.c.b16 %v132, %v131
    %vm141 = vcmask 523264
    %v143 = vsel %vm141, %v101, 0
    %145 = vmatprep.subr.bf16.mxu0 0
    %146 = vmatpush1.bf16.msra.mxu0 %v133
    %147 = vmatprep.subr.bf16.mxu0 0
    %148 = vmatpush1.bf16.msra.mxu0 %v134
    %149 = vmatprep.subr.bf16.mxu0 0
    %150 = vmatpush1.bf16.msra.mxu0 %v135
    %151 = vmatprep.subr.bf16.mxu0 0
    %152 = vmatpush1.bf16.msra.mxu0 %v136
    %153 = vmatprep.subr.bf16.mxu0 0
    %154 = vmatpush1.bf16.msra.mxu0 0
    %155 = vmatprep.subr.bf16.mxu0 0
    %156 = vmatpush1.bf16.msra.mxu0 0
    %157 = vmatprep.subr.bf16.mxu0 0
    %158 = vmatpush1.bf16.msra.mxu0 0
    %159 = vmatprep.subr.bf16.mxu0 0
    %160 = vmatpush1.bf16.msra.mxu0 0
    %161 = vmatprep.subr.bf16.mxu0 0
    %162 = vmatpush1.bf16.msra.mxu0 0
    %163 = vmatprep.subr.bf16.mxu0 0
    %164 = vmatpush1.bf16.msra.mxu0 0
    %165 = vmatprep.subr.bf16.mxu0 0
    %166 = vmatpush1.bf16.msra.mxu0 0
    %167 = vmatprep.subr.bf16.mxu0 0
    %168 = vmatpush1.bf16.msra.mxu0 0
    %169 = vmatprep.subr.bf16.mxu0 0
    %170 = vmatpush1.bf16.msra.mxu0 0
    %171 = vmatprep.subr.bf16.mxu0 0
    %172 = vmatpush1.bf16.msra.mxu0 0
    %173 = vmatprep.subr.bf16.mxu0 0
    %174 = vmatpush1.bf16.msra.mxu0 0
    %175 = vmatprep.subr.bf16.mxu0 0
    %176 = vmatpush1.bf16.msra.mxu0 0
    %177 = vmatprep.mubr.bf16.mxu0 0
    %178 = vmatmul.mubr.bf16.gmra.mrb[0].mxu0 %v143
    %v179 = vpop.f32.mrb[0].mxu0
    %v180 = vadd.f32 %v115, %v179
    %v181 = vpop.f32.mrb[0].mxu0
    %v182 = vpop.f32.mrb[0].mxu0
    %v183 = vpop.f32.mrb[0].mxu0
    %184 = vdwg.mxu0
    %vm185 = vcmp.ge.f32.partialorder %v180, 0.0
    %v186 = vmul.f32 %v180, 0.2
    %v187 = vsel %vm185, %v180, %v186
    %v188 = vld [vmem:[%s5] sm:$0x1]
    %v190 = vlaneseq
    %v191 = vshrl.u32 %v190, 7
    %v192 = vsub.s32 0, %v191
    %v193 = vrot.slane %v188, %v192
    %v195 = vmul.f32 %v187, %v193
    %v196 = vsel %vm54, %v195, 0.0
    %197 = vadd.xlane.f32.xlu0 %v196
    %v198 = vpop.xlane.xlu0 %197
    %199 = vxpose.xlu0.b32.start [1/16] %v198, 128
    %200 = vxpose.xlu0.b32.cont [2/16] 0.0, 128
    %201 = vxpose.xlu0.b32.cont [3/16] 0.0, 128
    %202 = vxpose.xlu0.b32.cont [4/16] 0.0, 128
    %203 = vxpose.xlu0.b32.cont [5/16] 0.0, 128
    %204 = vxpose.xlu0.b32.cont [6/16] 0.0, 128
    %205 = vxpose.xlu0.b32.cont [7/16] 0.0, 128
    %206 = vxpose.xlu0.b32.cont [8/16] 0.0, 128
    %207 = vxpose.xlu0.b32.cont [9/16] 0.0, 128
    %208 = vxpose.xlu0.b32.cont [10/16] 0.0, 128
    %209 = vxpose.xlu0.b32.cont [11/16] 0.0, 128
    %210 = vxpose.xlu0.b32.cont [12/16] 0.0, 128
    %211 = vxpose.xlu0.b32.cont [13/16] 0.0, 128
    %212 = vxpose.xlu0.b32.cont [14/16] 0.0, 128
    %213 = vxpose.xlu0.b32.cont [15/16] 0.0, 128
    %214 = vxpose.xlu0.b32.end [16/16] 0.0, 128
    %v215 = vpop.trf.xlu0
    %v216 = vpop.trf.xlu0
    %v217 = vpop.trf.xlu0
    %v218 = vpop.trf.xlu0
    %v219 = vpop.trf.xlu0
    %v220 = vpop.trf.xlu0
    %v221 = vpop.trf.xlu0
    %v222 = vpop.trf.xlu0
    %v223 = vpop.trf.xlu0
    %v224 = vpop.trf.xlu0
    %v225 = vpop.trf.xlu0
    %v226 = vpop.trf.xlu0
    %v227 = vpop.trf.xlu0
    %v228 = vpop.trf.xlu0
    %v229 = vpop.trf.xlu0
    %v230 = vpop.trf.xlu0
    %s231 = sld [smem:[#allocation2]]
    %v232 = vstv %s231
    %v233 = vadd.f32 %v215, %v232
    %v234 = vsub.f32 0.0, %v233
    %v235 = vmul.f32 %v234, 1.442695
    %v236 = vpow.pop %v235
    %v237 = vadd.f32 %v236, 1.0
    %v238 = vrcp.pop %v237
    %vm239 = vcmask 57344
    %240 = vst.msk [vmem:[#allocation3] sm:$0x1] %vm239, %v238
    // Predicated region
    $region30: #{discriminator_forward.1} parent=1 // pred_check
      _
    $region31: #{discriminator_forward.1} parent=1 // pred_check_branch
      %242 = sbr.rel (0) target = $region33
    $region32: #{discriminator_forward.1} parent=1 // pred_region
      %s244 = ssub.s32 16, 16
      %245 = vsyncadd [#allocation4], %s244
      %s247 = sshll.u32 [#allocation3], 4
      %s248 = int_to_ptr.vmem [resolvable:$true] %s247
      %250 = dma.vmem_to_hbm [thread:$0]  %s248, 16, %s7, [#allocation4]
    $region33: #{discriminator_forward.1} parent=1 // pred_fallthru
      _
    // Predicated region
    $region34: #{discriminator_forward.1} parent=1 // pred_check
      _
    $region35: #{discriminator_forward.1} parent=1 // pred_check_branch
      %252 = sbr.rel (0) target = $region37
    $region36: #{discriminator_forward.1} parent=1 // pred_region
      %253 = dma.done [#allocation4], 16
    $region37: #{discriminator_forward.1} parent=1 // pred_fallthru
      _
    %254 = vsyncpa [#allocation4], 1

</llo_original>
